<compile_context>
chip_gen: v5e
topology: v5e:2x2
jax: 0.10.0
libtpu: 0.0.40
codegen_flags: <defaults>
</compile_context>

<pallas_src>
import functools

import jax
import jax.numpy as jnp
from jax.experimental import pallas as pl
from jax.experimental.pallas import tpu as pltpu

_LANE = 128      # lane width for padded hidden dims
_SUBLANE = 8     # f32 sublane granule for the batch dim


def _round_up(x, m):
    return ((x + m - 1) // m) * m


def _cdiv(a, b):
    return -(-a // b)


# ---------------------------------------------------------------------------
# Fused kernel: refs = (x_ref, w0, b0, w1, b1, ..., out_ref).  Layer loop is
# unrolled; intermediates live in VMEM/vregs (compiler-allocated).
# ---------------------------------------------------------------------------
def _fused_encoder_kernel(*refs, num_layers):
    x_ref = refs[0]
    out_ref = refs[-1]
    h = x_ref[...].astype(jnp.float32)
    for l in range(num_layers):
        w = refs[1 + 2 * l][...]
        b = refs[2 + 2 * l][...]
        # MXU matmul in the weight dtype (f32 or bf16), f32 accumulation.
        h = jnp.dot(h.astype(w.dtype), w, preferred_element_type=jnp.float32)
        # (1, out) bias broadcasts implicitly; bias add + ReLU in f32 on the VPU.
        h = jnp.maximum(h + b.astype(jnp.float32), 0.0)
    out_ref[...] = h.astype(out_ref.dtype)


def _vmem_limit_bytes(tm, in_f, out_f, io_dtype, padded_params):
    itemsize = jnp.dtype(io_dtype).itemsize
    weight_bytes = sum(w.size * w.dtype.itemsize + b.size * b.dtype.itemsize
                       for w, b in padded_params)
    f_max = max([in_f, out_f] + [w.shape[1] for w, _ in padded_params])
    est = (2 * tm * in_f * itemsize          # double-buffered input tiles
           + 2 * tm * out_f * itemsize       # double-buffered output tiles
           + weight_bytes                    # whole-array, single-buffered weights
           + 4 * tm * f_max * 4)             # live f32 intermediates + headroom
    try:
        cap = int(pltpu.get_tpu_info().vmem_capacity_bytes)
    except Exception:
        cap = 64 << 20                       # v7x lower bound if query unavailable
    return min(max(int(est * 1.5), 16 << 20), (cap * 3) // 4)


def _fused_encoder_call(x_pad, padded_params, max_tm):
    """x_pad: (batch_pad, in_f) with batch_pad a multiple of 8; feature dim untouched."""
    batch_pad, in_f = x_pad.shape
    num_layers = len(padded_params)
    out_f = padded_params[-1][0].shape[1]

    flat_params = []
    for w, b in padded_params:
        flat_params.extend((w, b))

    kernel = functools.partial(_fused_encoder_kernel, num_layers=num_layers)
    out_shape = jax.ShapeDtypeStruct((batch_pad, out_f), x_pad.dtype)

    # Batch tile: as large as reasonable; partial final tile allowed (no tm-padding).
    tm = min(_round_up(max_tm, _SUBLANE), batch_pad)
    steps = _cdiv(batch_pad, tm)
    if steps > 1 and steps % 2 == 1:
        # v7x has 2 TensorCores; prefer an even step count for megacore balance.
        tm_even = _round_up(_cdiv(batch_pad, steps + 1), _SUBLANE)
        if _cdiv(batch_pad, tm_even) % 2 == 0:
            tm = tm_even
            steps = _cdiv(batch_pad, tm_even)

    vmem_limit = _vmem_limit_bytes(tm, in_f, out_f, x_pad.dtype, padded_params)

    if steps == 1:
        # Single tile: grid-less call, no per-step pipeline prologue/epilogue.
        return pl.pallas_call(
            kernel,
            out_shape=out_shape,
            compiler_params=pltpu.CompilerParams(vmem_limit_bytes=vmem_limit),
        )(x_pad, *flat_params)

    # Batch-tiled path: only x/out are pipelined; weights are whole-array VMEM
    # residents (no double-buffering of constant-index inputs).
    weight_spec = pl.BlockSpec(memory_space=pltpu.MemorySpace.VMEM)
    in_specs = [pl.BlockSpec((tm, in_f), lambda i: (i, 0))]
    in_specs += [weight_spec] * (2 * num_layers)
    out_specs = pl.BlockSpec((tm, out_f), lambda i: (i, 0))

    return pl.pallas_call(
        kernel,
        out_shape=out_shape,
        grid=(steps,),
        in_specs=in_specs,
        out_specs=out_specs,
        compiler_params=pltpu.CompilerParams(
            dimension_semantics=("parallel",),
            vmem_limit_bytes=vmem_limit,
        ),
    )(x_pad, *flat_params)


@functools.partial(jax.jit, static_argnames=("max_tm",))
def pretrained_encoder_forward(x, padded_params, *, max_tm=1024):
    """Forward pass of the full Linear->ReLU stack in a single Pallas kernel.

    x: (batch, input_size).  padded_params: output of pad_encoder_params.
    Passing a bf16 x (and bf16 params) halves HBM traffic; accumulation stays f32.
    """
    batch, in_f = x.shape
    assert in_f == padded_params[0][0].shape[0], "input feature dim mismatch"

    # Pad batch only to the 8-row sublane granule; no feature-dim padding of x.
    batch_pad = _round_up(batch, _SUBLANE)
    x_pad = jnp.pad(x, ((0, batch_pad - batch), (0, 0))) if batch_pad != batch else x

    y = _fused_encoder_call(x_pad, padded_params, max_tm)
    return y[:batch] if batch_pad != batch else y


# ---------------------------------------------------------------------------
# Parameter construction (mirrors nn.Linear default init; stored transposed [in, out])
# ---------------------------------------------------------------------------
def init_encoder_params(key, input_size, encoder_sizes, dtype=jnp.float32):
    sizes = [input_size] + list(encoder_sizes)
    params = []
    for i in range(len(sizes) - 1):
        key, kw, kb = jax.random.split(key, 3)
        fan_in = sizes[i]
        bound = 1.0 / float(fan_in) ** 0.5
        w = jax.random.uniform(kw, (sizes[i], sizes[i + 1]),
                               minval=-bound, maxval=bound, dtype=dtype)
        b = jax.random.uniform(kb, (1, sizes[i + 1]),
                               minval=-bound, maxval=bound, dtype=dtype)
        params.append((w, b))
    return params


def cast_params(params, dtype):
    """Cast weight/bias storage dtype (e.g. bf16); accumulation remains f32 in-kernel."""
    return [(w.astype(dtype), b.astype(dtype)) for w, b in params]


def pad_encoder_params(params):
    """Zero-pad INTERNAL hidden dims to 128 lanes (done once).

    Layer 0 keeps its true input dim; the last layer keeps its true output dim, so
    neither x nor the kernel output needs feature-dim padding or a wrapper slice.
    Padded lanes stay exactly zero through every layer (zero weight rows, zero bias
    lanes, relu(0)=0).
    """
    n = len(params)
    padded = []
    for idx, (w, b) in enumerate(params):
        in_f, out_f = w.shape
        in_pad = in_f if idx == 0 else _round_up(in_f, _LANE)
        out_pad = out_f if idx == n - 1 else _round_up(out_f, _LANE)
        w_p = jnp.pad(w, ((0, in_pad - in_f), (0, out_pad - out_f)))
        b_p = jnp.pad(b, ((0, 0), (0, out_pad - out_f)))
        padded.append((w_p, b_p))
    return tuple(padded)


def _reference_forward(x, params):
    for w, b in params:
        x = jnp.maximum(x @ w.astype(jnp.float32) + b.astype(jnp.float32), 0.0)
    return x


if __name__ == "__main__":
    # Shapes consistent with the module:
    #   args = {'perf_input_size': 32, 'perf_encoder_sizes': [64, 32]}
    batch = 8
    input_size = 32
    encoder_sizes = [64, 32]

    key = jax.random.PRNGKey(0)
    key, kx = jax.random.split(key)
    x = jax.random.normal(kx, (batch, input_size), dtype=jnp.float32)

    params = init_encoder_params(key, input_size, encoder_sizes)
    padded_params = pad_encoder_params(params)

    # Small batch: single-tile (grid-less) path.
    out = pretrained_encoder_forward(x, padded_params)
    out = jax.block_until_ready(out)
    ref = _reference_forward(x, params)
    assert out.shape == (batch, encoder_sizes[-1])
    assert jnp.allclose(out, ref, atol=1e-5, rtol=1e-5), "mismatch vs reference"

    # Larger batch, not a multiple of the tile: gridded, parallel path with a
    # partial final tile and batch-only padding/slicing.
    key, kx2 = jax.random.split(key)
    x2 = jax.random.normal(kx2, (1000, input_size), dtype=jnp.float32)
    out2 = pretrained_encoder_forward(x2, padded_params, max_tm=256)
    out2 = jax.block_until_ready(out2)
    ref2 = _reference_forward(x2, params)
    assert out2.shape == (1000, encoder_sizes[-1])
    assert jnp.allclose(out2, ref2, atol=1e-4, rtol=1e-4), "tiled mismatch vs reference"

    # bf16 weight storage (halves weight DMA; MXU bf16 with f32 accumulation).
    bf16_padded = pad_encoder_params(cast_params(params, jnp.bfloat16))
    out3 = pretrained_encoder_forward(x2, bf16_padded, max_tm=256)
    out3 = jax.block_until_ready(out3)
    assert out3.shape == (1000, encoder_sizes[-1])
    assert jnp.allclose(out3, ref2, atol=5e-2, rtol=5e-2), "bf16 mismatch vs reference"

    print("KERNEL_OK")
</pallas_src>

<mosaic_0001>
module attributes {stable_mosaic.version = 11 : i64} {
  func.func @_fused_encoder_kernel(%arg0: memref<8x32xf32, #tpu.memory_space<vmem>>, %arg1: memref<32x128xf32, #tpu.memory_space<vmem>>, %arg2: memref<1x128xf32, #tpu.memory_space<vmem>>, %arg3: memref<128x32xf32, #tpu.memory_space<vmem>>, %arg4: memref<1x32xf32, #tpu.memory_space<vmem>>, %arg5: memref<8x32xf32, #tpu.memory_space<vmem>>) attributes {dimension_semantics = [], scalar_prefetch = 0 : i64, scratch_operands = 0 : i64, tpu.core_type = #tpu.core_type<tc>} {
    %c0 = arith.constant 0 : index
    %c0_0 = arith.constant 0 : index
    %0 = vector.load %arg0[%c0, %c0_0] : memref<8x32xf32, #tpu.memory_space<vmem>>, vector<8x32xf32>
    %c0_1 = arith.constant 0 : index
    %c0_2 = arith.constant 0 : index
    %1 = vector.load %arg1[%c0_1, %c0_2] : memref<32x128xf32, #tpu.memory_space<vmem>>, vector<32x128xf32>
    %c0_3 = arith.constant 0 : index
    %c0_4 = arith.constant 0 : index
    %2 = vector.load %arg2[%c0_3, %c0_4] : memref<1x128xf32, #tpu.memory_space<vmem>>, vector<1x128xf32>
    %cst = arith.constant dense<0.000000e+00> : vector<8x128xf32>
    %3 = tpu.matmul %0, %1, %cst {dimension_numbers = #tpu.dot_dimension_numbers<[1], [0], [0], [1], [0, 0, 1, 1], [], []>} : vector<8x32xf32>, vector<32x128xf32>, vector<8x128xf32> -> vector<8x128xf32>
    %4 = vector.broadcast %2 : vector<1x128xf32> to vector<8x128xf32>
    %5 = arith.addf %3, %4 : vector<8x128xf32>
    %cst_5 = arith.constant 0.000000e+00 : f32
    %6 = vector.broadcast %cst_5 : f32 to vector<8x128xf32>
    %7 = arith.maximumf %5, %6 : vector<8x128xf32>
    %c0_6 = arith.constant 0 : index
    %c0_7 = arith.constant 0 : index
    %8 = vector.load %arg3[%c0_6, %c0_7] : memref<128x32xf32, #tpu.memory_space<vmem>>, vector<128x32xf32>
    %c0_8 = arith.constant 0 : index
    %c0_9 = arith.constant 0 : index
    %9 = vector.load %arg4[%c0_8, %c0_9] : memref<1x32xf32, #tpu.memory_space<vmem>>, vector<1x32xf32>
    %cst_10 = arith.constant dense<0.000000e+00> : vector<8x32xf32>
    %10 = tpu.matmul %7, %8, %cst_10 {dimension_numbers = #tpu.dot_dimension_numbers<[1], [0], [0], [1], [0, 0, 1, 1], [], []>} : vector<8x128xf32>, vector<128x32xf32>, vector<8x32xf32> -> vector<8x32xf32>
    %11 = vector.broadcast %9 : vector<1x32xf32> to vector<8x32xf32>
    %12 = arith.addf %10, %11 : vector<8x32xf32>
    %cst_11 = arith.constant 0.000000e+00 : f32
    %13 = vector.broadcast %cst_11 : f32 to vector<8x32xf32>
    %14 = arith.maximumf %12, %13 : vector<8x32xf32>
    %c0_12 = arith.constant 0 : index
    %c0_13 = arith.constant 0 : index
    %15 = vector.load %arg5[%c0_12, %c0_13] : memref<8x32xf32, #tpu.memory_space<vmem>>, vector<8x32xf32>
    tpu.vector_store %arg5[%c0_12, %c0_13], %14 {strides = array<i32>} : memref<8x32xf32, #tpu.memory_space<vmem>>, vector<8x32xf32>,
    return
  }
}

</mosaic_0001>

<llo_original>
// kernel: pretrained_encoder_forward.1
$region0: #{pretrained_encoder_forward.1}
  #allocation0 [shape = 'u32[]', space=smem, size = 0x4, offset = 0x4, fixed_abs, tag = 'smem constant byte address 0x4 - core index']
  #allocation1 [shape = 'u32[72,128]{1,0:T(1,128)}', space=vmem, size = 0x9000, scoped, tag = 'internal scratch']
  %s0 = inlined_call_operand.vmem [shape: f32[8,32], index: 0, kind: input, shape index: {}]
  %s1 = inlined_call_operand.vmem [shape: f32[32,128], index: 1, kind: input, shape index: {}]
  %s2 = inlined_call_operand.vmem [shape: f32[1,128], index: 2, kind: input, shape index: {}]
  %s3 = inlined_call_operand.vmem [shape: f32[128,32], index: 3, kind: input, shape index: {}]
  %s4 = inlined_call_operand.vmem [shape: f32[1,32], index: 4, kind: input, shape index: {}]
  %s5 = inlined_call_operand.hbm [shape: f32[8,32], index: 5, kind: output, shape index: {}]
  %s6 = sld [smem:[#allocation0]]
  $region30: #{pretrained_encoder_forward.1} parent=0
    _
  %s8 = ssub.s32 1, %s6
  %s9 = scalar_select 0, %s8, %s6
  $region1: #{pretrained_encoder_forward.1} parent=0
    #allocation2 [shape = 'u8[4096]{0}', space=vmem, size = 0x1000, scoped, tag = 'output window, operand 0, single buffered']
    #allocation3 [shape = 's32[1]{0}', space=sflag, size = 0x4, scoped, tag = 'scoped memory for pretrained_encoder_forward.1']
    %10 = vsyncpa [#allocation3], 0
    // Predicated region
    $region2: #{pretrained_encoder_forward.1} parent=1 // pred_check
      _
    $region3: #{pretrained_encoder_forward.1} parent=1 // pred_check_branch
      %12 = sbr.rel (0) target = $region5
    $region4: #{pretrained_encoder_forward.1} parent=1 // pred_region
      _
    $region5: #{pretrained_encoder_forward.1} parent=1 // pred_fallthru
      _
    // Predicated region
    $region6: #{pretrained_encoder_forward.1} parent=1 // pred_check
      _
    $region7: #{pretrained_encoder_forward.1} parent=1 // pred_check_branch
      %14 = sbr.rel (0) target = $region9
    $region8: #{pretrained_encoder_forward.1} parent=1 // pred_region
      _
    $region9: #{pretrained_encoder_forward.1} parent=1 // pred_fallthru
      _
    // Predicated region
    $region10: #{pretrained_encoder_forward.1} parent=1 // pred_check
      _
    $region11: #{pretrained_encoder_forward.1} parent=1 // pred_check_branch
      %16 = sbr.rel (0) target = $region13
    $region12: #{pretrained_encoder_forward.1} parent=1 // pred_region
      _
    $region13: #{pretrained_encoder_forward.1} parent=1 // pred_fallthru
      _
    // Predicated region
    $region14: #{pretrained_encoder_forward.1} parent=1 // pred_check
      _
    $region15: #{pretrained_encoder_forward.1} parent=1 // pred_check_branch
      %18 = sbr.rel (0) target = $region17
    $region16: #{pretrained_encoder_forward.1} parent=1 // pred_region
      _
    $region17: #{pretrained_encoder_forward.1} parent=1 // pred_fallthru
      _
    // Predicated region
    $region18: #{pretrained_encoder_forward.1} parent=1 // pred_check
      _
    $region19: #{pretrained_encoder_forward.1} parent=1 // pred_check_branch
      %20 = sbr.rel (0) target = $region21
    $region20: #{pretrained_encoder_forward.1} parent=1 // pred_region
      _
    $region21: #{pretrained_encoder_forward.1} parent=1 // pred_fallthru
      _
    %v21 = vld [vmem:[%s0] sm:$0xff]
    %v22 = vld [vmem:[%s1] sm:$0xff]
    %v23 = vld [vmem:[%s1 + $0x8] sm:$0xff]
    %v24 = vld [vmem:[%s1 + $0x10] sm:$0xff]
    %v25 = vld [vmem:[%s1 + $0x18] sm:$0xff]
    %v26 = vld [vmem:[%s2] sm:$0x1]
    %v28 = vperm.slane %v26, 0
    %vm30 = vcmask 261120
    %v32 = vsel %vm30, %v21, 0
    %34 = vmatpush.msra.mxu0 0.0
    %35 = vmatpush.msra.mxu0 0.0
    %36 = vmatpush.msra.mxu0 0.0
    %37 = vmatpush.msra.mxu0 0.0
    %38 = vmatpush.msra.mxu0 0.0
    %39 = vmatpush.msra.mxu0 0.0
    %40 = vmatpush.msra.mxu0 0.0
    %41 = vmatpush.msra.mxu0 0.0
    %42 = vmatpush.msra.mxu0 0.0
    %43 = vmatpush.msra.mxu0 0.0
    %44 = vmatpush.msra.mxu0 0.0
    %45 = vmatpush.msra.mxu0 0.0
    %46 = vmatpush.msra.mxu0 %v25
    %47 = vmatpush.msra.mxu0 %v24
    %48 = vmatpush.msra.mxu0 %v23
    %49 = vmatpush.msra.mxu0 %v22
    %50 = vmatmul.f32.gmra.mxu0 %v32
    %v51 = vpop.f32.mrf.mxu0
    %v52 = vadd.f32 %v28, %v51
    %53 = vdwg.mxu0
    %v54 = vmax.f32 %v52, 0.0
    %v55 = vld [vmem:[%s3] sm:$0xff]
    %v56 = vld [vmem:[%s3 + $0x8] sm:$0xff]
    %v57 = vld [vmem:[%s3 + $0x10] sm:$0xff]
    %v58 = vld [vmem:[%s3 + $0x18] sm:$0xff]
    %v59 = vld [vmem:[%s3 + $0x20] sm:$0xff]
    %v60 = vld [vmem:[%s3 + $0x28] sm:$0xff]
    %v61 = vld [vmem:[%s3 + $0x30] sm:$0xff]
    %v62 = vld [vmem:[%s3 + $0x38] sm:$0xff]
    %v63 = vld [vmem:[%s3 + $0x40] sm:$0xff]
    %v64 = vld [vmem:[%s3 + $0x48] sm:$0xff]
    %v65 = vld [vmem:[%s3 + $0x50] sm:$0xff]
    %v66 = vld [vmem:[%s3 + $0x58] sm:$0xff]
    %v67 = vld [vmem:[%s3 + $0x60] sm:$0xff]
    %v68 = vld [vmem:[%s3 + $0x68] sm:$0xff]
    %v69 = vld [vmem:[%s3 + $0x70] sm:$0xff]
    %v70 = vld [vmem:[%s3 + $0x78] sm:$0xff]
    %v71 = vld [vmem:[%s4] sm:$0x1]
    %v73 = vperm.slane %v71, 0
    %75 = vmatpush.msra.mxu0 %v70
    %76 = vmatpush.msra.mxu0 %v69
    %77 = vmatpush.msra.mxu0 %v68
    %78 = vmatpush.msra.mxu0 %v67
    %79 = vmatpush.msra.mxu0 %v66
    %80 = vmatpush.msra.mxu0 %v65
    %81 = vmatpush.msra.mxu0 %v64
    %82 = vmatpush.msra.mxu0 %v63
    %83 = vmatpush.msra.mxu0 %v62
    %84 = vmatpush.msra.mxu0 %v61
    %85 = vmatpush.msra.mxu0 %v60
    %86 = vmatpush.msra.mxu0 %v59
    %87 = vmatpush.msra.mxu0 %v58
    %88 = vmatpush.msra.mxu0 %v57
    %89 = vmatpush.msra.mxu0 %v56
    %90 = vmatpush.msra.mxu0 %v55
    %91 = vmatmul.f32.gmra.mxu0 %v54
    %v92 = vpop.f32.mrf.mxu0
    %v93 = vadd.f32 %v73, %v92
    %94 = vdwg.mxu0
    %v95 = vmax.f32 %v93, 0.0
    %96 = vst.msk [vmem:[#allocation2] sm:$0xff] %vm30, %v95
    // Predicated region
    $region22: #{pretrained_encoder_forward.1} parent=1 // pred_check
      _
    $region23: #{pretrained_encoder_forward.1} parent=1 // pred_check_branch
      %98 = sbr.rel (0) target = $region25
    $region24: #{pretrained_encoder_forward.1} parent=1 // pred_region
      %100 = vsyncadd [#allocation3], 0
      %s102 = sshll.u32 [#allocation2], 4
      %s103 = int_to_ptr.vmem [resolvable:$true] %s102
      %s104 = sshll.u32 %s5, 4
      %s105 = int_to_ptr.hbm [resolvable:$true] %s104
      %107 = dma.vmem_to_hbm [thread:$0]  %s103, 128, %s105, [#allocation3]
    $region25: #{pretrained_encoder_forward.1} parent=1 // pred_fallthru
      _
    // Predicated region
    $region26: #{pretrained_encoder_forward.1} parent=1 // pred_check
      _
    $region27: #{pretrained_encoder_forward.1} parent=1 // pred_check_branch
      %109 = sbr.rel (0) target = $region29
    $region28: #{pretrained_encoder_forward.1} parent=1 // pred_region
      %111 = dma.done [#allocation3], 128
    $region29: #{pretrained_encoder_forward.1} parent=1 // pred_fallthru
      _
    %112 = vsyncpa [#allocation3], 1

</llo_original>
